<compile_context>
chip_gen: v7x
topology: tpu7x:2x2x1
jax: 0.10.0
libtpu: 0.0.40
codegen_flags: <defaults>
</compile_context>

<pallas_src>
import functools
import math

import jax
import jax.numpy as jnp
from jax import lax
from jax.experimental import pallas as pl
from jax.experimental.pallas import tpu as pltpu


def _pick_tile(n, target):
    """Largest multiple of 8 that divides n and is <= target (else n itself)."""
    t = min(n, target)
    t -= t % 8
    while t >= 8:
        if n % t == 0:
            return t
        t -= 8
    return n  # prime-ish n: fall back to full extent (may cost VMEM for huge T)


def _vmem_limit_bytes():
    """Generation-adaptive VMEM budget: ~96 MiB on v5e/v6e, ~48 MiB on v7x."""
    cap = 128 * 1024 * 1024
    try:
        cap = int(getattr(pltpu.get_tpu_info(), "vmem_capacity_bytes", cap))
    except Exception:
        pass
    return min((cap * 3) // 4, 100 * 1024 * 1024)


def _qkv_proj_kernel(xq_ref, xk_ref, xv_ref, wq_ref, bq_ref, wk_ref, wv_ref,
                     q_out, k_out, v_out, *, n_head, head_dim):
    bf16 = jnp.bfloat16
    # bf16 MXU operands, f32 accumulation.  1/sqrt(hd) is folded into wq/bq;
    # bk is dropped and bv is folded into the output bias in the wrapper.
    qp = jnp.dot(xq_ref[0].astype(bf16), wq_ref[...],
                 preferred_element_type=jnp.float32) + bq_ref[...]
    kp = jnp.dot(xk_ref[0].astype(bf16), wk_ref[...],
                 preferred_element_type=jnp.float32)
    vp = jnp.dot(xv_ref[0].astype(bf16), wv_ref[...],
                 preferred_element_type=jnp.float32)
    # One-time relayout to per-head (B, H, T, hd): static lane slices here so
    # the attention kernel never slices lanes in its hot loop.
    for h in range(n_head):
        lo, hi = h * head_dim, (h + 1) * head_dim
        q_out[0, h] = qp[:, lo:hi].astype(bf16)
        k_out[0, h] = kp[:, lo:hi].astype(bf16)
        v_out[0, h] = vp[:, lo:hi].astype(bf16)


def _flash_mha_kernel(q_ref, k_ref, v_ref, wc_ref, bc_ref, o_ref,
                      m_sc, l_sc, acc_sc, *, n_head):
    ki = pl.program_id(2)
    bf16 = jnp.bfloat16

    @pl.when(ki == 0)
    def _():
        m_sc[...] = jnp.full(m_sc.shape, -jnp.inf, jnp.float32)
        l_sc[...] = jnp.zeros(l_sc.shape, jnp.float32)
        acc_sc[...] = jnp.zeros(acc_sc.shape, jnp.float32)

    def head_step(h, carry):
        qh = q_ref[0, h]            # (tq,  hd) bf16, leading-axis index (free)
        kh = k_ref[0, h]            # (tkv, hd) bf16
        vh = v_ref[0, h]            # (tkv, hd) bf16
        # Contract over head_dim (no kh.T materialised); f32 accumulation.
        s = lax.dot_general(qh, kh, (((1,), (1,)), ((), ())),
                            preferred_element_type=jnp.float32)   # (tq, tkv)
        m_prev = m_sc[h]                                          # (tq, 1)
        m_new = jnp.maximum(m_prev, jnp.max(s, axis=-1, keepdims=True))
        alpha = jnp.exp(m_prev - m_new)
        p = jnp.exp(s - m_new)
        l_sc[h] = alpha * l_sc[h] + jnp.sum(p, axis=-1, keepdims=True)
        acc_sc[h] = alpha * acc_sc[h] + jnp.dot(
            p.astype(bf16), vh, preferred_element_type=jnp.float32)
        m_sc[h] = m_new
        return carry

    # fori_loop (not a Python unroll) bounds each head's (tq, tkv) score /
    # prob working set so the scheduler cannot interleave heads and spill.
    lax.fori_loop(0, n_head, head_step, 0, unroll=False)

    @pl.when(ki == pl.num_programs(2) - 1)
    def _():
        # Normalise, assemble all heads along lanes (static concat, once per
        # query tile), then ONE full-width (tq, D) @ (D, D) output projection.
        parts = [
            (acc_sc[h] * pl.reciprocal(l_sc[h], approx=True)).astype(bf16)
            for h in range(n_head)
        ]
        ctx = parts[0] if n_head == 1 else jnp.concatenate(parts, axis=-1)
        out = jnp.dot(ctx, wc_ref[...],
                      preferred_element_type=jnp.float32) + bc_ref[...]
        o_ref[0] = out.astype(o_ref.dtype)


def mha_forward(q, k, v, params, n_head, *,
                q_tile=512, kv_tile=1024, proj_tile=512):
    """Forward pass of MutiHeadAttention (mask=None).

    params: PyTorch-layout weights (out_features, in_features) + biases:
    wq, bq, wk, bk, wv, bv, wc, bc.
    """
    B, T, D = q.shape
    assert D % n_head == 0
    hd = D // n_head
    inv_sqrt = 1.0 / math.sqrt(hd)
    f32 = jnp.float32
    bf16 = jnp.bfloat16

    # Pre-transpose to x @ W layout; exact folds (mask=None): scale into
    # Wq/bq, drop bk, fold bv into the output bias (computed in f32).
    wq_s = (params["wq"].T.astype(f32) * inv_sqrt).astype(bf16)
    bq_s = (params["bq"].astype(f32) * inv_sqrt).reshape(1, D)
    wk_t = params["wk"].T.astype(bf16)
    wv_t = params["wv"].T.astype(bf16)
    wc_t = params["wc"].T.astype(bf16)
    bc_eff = (params["bc"].astype(f32)
              + params["bv"].astype(f32) @ params["wc"].T.astype(f32)
              ).reshape(1, D)

    tq = _pick_tile(T, q_tile)
    tkv = _pick_tile(T, kv_tile)
    tp = _pick_tile(T, proj_tile)
    vmem_limit = _vmem_limit_bytes()

    # Grid-invariant weights/biases: whole-array VMEM residents.
    w_res = pl.BlockSpec(memory_space=pltpu.MemorySpace.VMEM)

    # ---- kernel 1: Q/K/V projections -> per-head (B, H, T, hd) bf16 -------
    seq_spec = pl.BlockSpec((1, tp, D), lambda b, t: (b, t, 0))
    head_out_spec = pl.BlockSpec((1, n_head, tp, hd), lambda b, t: (b, 0, t, 0))
    proj_kernel = functools.partial(_qkv_proj_kernel, n_head=n_head, head_dim=hd)
    qkv_shape = jax.ShapeDtypeStruct((B, n_head, T, hd), bf16)
    Qh, Kh, Vh = pl.pallas_call(
        proj_kernel,
        out_shape=(qkv_shape, qkv_shape, qkv_shape),
        grid_spec=pltpu.PrefetchScalarGridSpec(
            num_scalar_prefetch=0,
            grid=(B, T // tp),
            in_specs=[seq_spec, seq_spec, seq_spec, w_res, w_res, w_res, w_res],
            out_specs=(head_out_spec, head_out_spec, head_out_spec)),
        compiler_params=pltpu.CompilerParams(
            dimension_semantics=("parallel", "parallel"),
            vmem_limit_bytes=vmem_limit),
    )(q, k, v, wq_s, bq_s, wk_t, wv_t)

    # ---- kernel 2: flash attention + fused output projection --------------
    q_spec = pl.BlockSpec((1, n_head, tq, hd), lambda b, qi, ki: (b, 0, qi, 0))
    kv_spec = pl.BlockSpec((1, n_head, tkv, hd), lambda b, qi, ki: (b, 0, ki, 0))
    o_spec = pl.BlockSpec((1, tq, D), lambda b, qi, ki: (b, qi, 0))

    kernel = functools.partial(_flash_mha_kernel, n_head=n_head)
    return pl.pallas_call(
        kernel,
        out_shape=jax.ShapeDtypeStruct((B, T, D), q.dtype),
        grid_spec=pltpu.PrefetchScalarGridSpec(
            num_scalar_prefetch=0,
            grid=(B, T // tq, T // tkv),
            in_specs=[q_spec, kv_spec, kv_spec, w_res, w_res],
            out_specs=o_spec,
            scratch_shapes=[
                pltpu.VMEM((n_head, tq, 1), f32),    # running row max
                pltpu.VMEM((n_head, tq, 1), f32),    # running softmax denom
                pltpu.VMEM((n_head, tq, hd), f32),   # running context
            ]),
        compiler_params=pltpu.CompilerParams(
            dimension_semantics=("parallel", "parallel", "arbitrary"),
            vmem_limit_bytes=vmem_limit),
    )(Qh, Kh, Vh, wc_t, bc_eff)


def _reference(q, k, v, params, n_head):
    B, T, D = q.shape
    hd = D // n_head

    def lin(x, w, b):
        return x @ w.T + b

    Q = lin(q, params["wq"], params["bq"]).reshape(B, T, n_head, hd).transpose(0, 2, 1, 3)
    K = lin(k, params["wk"], params["bk"]).reshape(B, T, n_head, hd).transpose(0, 2, 1, 3)
    V = lin(v, params["wv"], params["bv"]).reshape(B, T, n_head, hd).transpose(0, 2, 1, 3)
    s = (Q @ K.transpose(0, 1, 3, 2)) / math.sqrt(hd)
    p = jax.nn.softmax(s, axis=-1)
    ctx = (p @ V).transpose(0, 2, 1, 3).reshape(B, T, D)
    return lin(ctx, params["wc"], params["bc"])


if __name__ == "__main__":
    B, T, D, H = 2, 8, 32, 4

    key = jax.random.PRNGKey(0)
    keys = jax.random.split(key, 11)
    scale = 1.0 / math.sqrt(D)
    params = {
        "wq": jax.random.uniform(keys[0], (D, D), jnp.float32, -scale, scale),
        "bq": jax.random.uniform(keys[1], (D,), jnp.float32, -scale, scale),
        "wk": jax.random.uniform(keys[2], (D, D), jnp.float32, -scale, scale),
        "bk": jax.random.uniform(keys[3], (D,), jnp.float32, -scale, scale),
        "wv": jax.random.uniform(keys[4], (D, D), jnp.float32, -scale, scale),
        "bv": jax.random.uniform(keys[5], (D,), jnp.float32, -scale, scale),
        "wc": jax.random.uniform(keys[6], (D, D), jnp.float32, -scale, scale),
        "bc": jax.random.uniform(keys[7], (D,), jnp.float32, -scale, scale),
    }
    q = jax.random.normal(keys[8], (B, T, D), jnp.float32)
    k = jax.random.normal(keys[9], (B, T, D), jnp.float32)
    v = jax.random.normal(keys[10], (B, T, D), jnp.float32)

    out = mha_forward(q, k, v, params, H)
    out = jax.block_until_ready(out)

    ref = _reference(q, k, v, params, H)
    assert out.shape == (B, T, D)
    err = float(jnp.max(jnp.abs(out - ref)))
    # bf16 MXU operands -> relaxed tolerance (f32 accumulation + f32 softmax
    # stats keep the error ~1e-2).
    assert jnp.allclose(out, ref, atol=2e-2, rtol=2e-2), err

    print("KERNEL_OK")
</pallas_src>

<mosaic_0001>
module attributes {stable_mosaic.version = 11 : i64} {
  func.func @_qkv_proj_kernel(%arg0: i32, %arg1: i32, %arg2: memref<1x8x32xf32, #tpu.memory_space<vmem>>, %arg3: memref<1x8x32xf32, #tpu.memory_space<vmem>>, %arg4: memref<1x8x32xf32, #tpu.memory_space<vmem>>, %arg5: memref<32x32xbf16, #tpu.memory_space<vmem>>, %arg6: memref<1x32xf32, #tpu.memory_space<vmem>>, %arg7: memref<32x32xbf16, #tpu.memory_space<vmem>>, %arg8: memref<32x32xbf16, #tpu.memory_space<vmem>>, %arg9: memref<1x4x8x8xbf16, #tpu.memory_space<vmem>>, %arg10: memref<1x4x8x8xbf16, #tpu.memory_space<vmem>>, %arg11: memref<1x4x8x8xbf16, #tpu.memory_space<vmem>>) attributes {dimension_semantics = [#tpu.dimension_semantics<parallel>, #tpu.dimension_semantics<parallel>], iteration_bounds = array<i64: 2, 1>, scalar_prefetch = 0 : i64, scratch_operands = 0 : i64, tpu.core_type = #tpu.core_type<tc>, window_params = [{transform_indices = @transform_0, window_bounds = array<i64: 1, 8, 32>}, {transform_indices = @transform_1, window_bounds = array<i64: 1, 8, 32>}, {transform_indices = @transform_2, window_bounds = array<i64: 1, 8, 32>}, {pipeline_mode = #tpu.pipeline_mode<synchronous>, transform_indices = @transform_3, window_bounds = array<i64: 32, 32>}, {pipeline_mode = #tpu.pipeline_mode<synchronous>, transform_indices = @transform_4, window_bounds = array<i64: 1, 32>}, {pipeline_mode = #tpu.pipeline_mode<synchronous>, transform_indices = @transform_5, window_bounds = array<i64: 32, 32>}, {pipeline_mode = #tpu.pipeline_mode<synchronous>, transform_indices = @transform_6, window_bounds = array<i64: 32, 32>}, {transform_indices = @transform_7, window_bounds = array<i64: 1, 4, 8, 8>}, {transform_indices = @transform_8, window_bounds = array<i64: 1, 4, 8, 8>}, {transform_indices = @transform_9, window_bounds = array<i64: 1, 4, 8, 8>}]} {
    %c0 = arith.constant 0 : index
    %c0_0 = arith.constant 0 : index
    %c0_1 = arith.constant 0 : index
    %0 = vector.load %arg2[%c0, %c0_0, %c0_1] : memref<1x8x32xf32, #tpu.memory_space<vmem>>, vector<1x8x32xf32>
    %1 = vector.shape_cast %0 : vector<1x8x32xf32> to vector<8x32xf32>
    %2 = arith.truncf %1 : vector<8x32xf32> to vector<8x32xbf16>
    %c0_2 = arith.constant 0 : index
    %c0_3 = arith.constant 0 : index
    %3 = vector.load %arg5[%c0_2, %c0_3] : memref<32x32xbf16, #tpu.memory_space<vmem>>, vector<32x32xbf16>
    %cst = arith.constant dense<0.000000e+00> : vector<8x32xf32>
    %4 = tpu.matmul %2, %3, %cst {dimension_numbers = #tpu.dot_dimension_numbers<[1], [0], [0], [1], [0, 0, 1, 1], [], []>} : vector<8x32xbf16>, vector<32x32xbf16>, vector<8x32xf32> -> vector<8x32xf32>
    %c0_4 = arith.constant 0 : index
    %c0_5 = arith.constant 0 : index
    %5 = vector.load %arg6[%c0_4, %c0_5] : memref<1x32xf32, #tpu.memory_space<vmem>>, vector<1x32xf32>
    %6 = vector.broadcast %5 : vector<1x32xf32> to vector<8x32xf32>
    %7 = arith.addf %4, %6 : vector<8x32xf32>
    %c0_6 = arith.constant 0 : index
    %c0_7 = arith.constant 0 : index
    %c0_8 = arith.constant 0 : index
    %8 = vector.load %arg3[%c0_6, %c0_7, %c0_8] : memref<1x8x32xf32, #tpu.memory_space<vmem>>, vector<1x8x32xf32>
    %9 = vector.shape_cast %8 : vector<1x8x32xf32> to vector<8x32xf32>
    %10 = arith.truncf %9 : vector<8x32xf32> to vector<8x32xbf16>
    %c0_9 = arith.constant 0 : index
    %c0_10 = arith.constant 0 : index
    %11 = vector.load %arg7[%c0_9, %c0_10] : memref<32x32xbf16, #tpu.memory_space<vmem>>, vector<32x32xbf16>
    %cst_11 = arith.constant dense<0.000000e+00> : vector<8x32xf32>
    %12 = tpu.matmul %10, %11, %cst_11 {dimension_numbers = #tpu.dot_dimension_numbers<[1], [0], [0], [1], [0, 0, 1, 1], [], []>} : vector<8x32xbf16>, vector<32x32xbf16>, vector<8x32xf32> -> vector<8x32xf32>
    %c0_12 = arith.constant 0 : index
    %c0_13 = arith.constant 0 : index
    %c0_14 = arith.constant 0 : index
    %13 = vector.load %arg4[%c0_12, %c0_13, %c0_14] : memref<1x8x32xf32, #tpu.memory_space<vmem>>, vector<1x8x32xf32>
    %14 = vector.shape_cast %13 : vector<1x8x32xf32> to vector<8x32xf32>
    %15 = arith.truncf %14 : vector<8x32xf32> to vector<8x32xbf16>
    %c0_15 = arith.constant 0 : index
    %c0_16 = arith.constant 0 : index
    %16 = vector.load %arg8[%c0_15, %c0_16] : memref<32x32xbf16, #tpu.memory_space<vmem>>, vector<32x32xbf16>
    %cst_17 = arith.constant dense<0.000000e+00> : vector<8x32xf32>
    %17 = tpu.matmul %15, %16, %cst_17 {dimension_numbers = #tpu.dot_dimension_numbers<[1], [0], [0], [1], [0, 0, 1, 1], [], []>} : vector<8x32xbf16>, vector<32x32xbf16>, vector<8x32xf32> -> vector<8x32xf32>
    %18 = vector.extract_strided_slice %7 {offsets = [0, 0], sizes = [8, 8], strides = [1, 1]} : vector<8x32xf32> to vector<8x8xf32>
    %19 = arith.truncf %18 : vector<8x8xf32> to vector<8x8xbf16>
    %c0_18 = arith.constant 0 : index
    %c0_19 = arith.constant 0 : index
    %c0_20 = arith.constant 0 : index
    %c0_21 = arith.constant 0 : index
    %20 = vector.load %arg9[%c0_18, %c0_19, %c0_20, %c0_21] : memref<1x4x8x8xbf16, #tpu.memory_space<vmem>>, vector<1x1x8x8xbf16>
    %21 = vector.shape_cast %20 : vector<1x1x8x8xbf16> to vector<8x8xbf16>
    %22 = vector.shape_cast %19 : vector<8x8xbf16> to vector<1x1x8x8xbf16>
    tpu.vector_store %arg9[%c0_18, %c0_19, %c0_20, %c0_21], %22 {strides = array<i32>} : memref<1x4x8x8xbf16, #tpu.memory_space<vmem>>, vector<1x1x8x8xbf16>,
    %23 = vector.extract_strided_slice %12 {offsets = [0, 0], sizes = [8, 8], strides = [1, 1]} : vector<8x32xf32> to vector<8x8xf32>
    %24 = arith.truncf %23 : vector<8x8xf32> to vector<8x8xbf16>
    %c0_22 = arith.constant 0 : index
    %c0_23 = arith.constant 0 : index
    %c0_24 = arith.constant 0 : index
    %c0_25 = arith.constant 0 : index
    %25 = vector.load %arg10[%c0_22, %c0_23, %c0_24, %c0_25] : memref<1x4x8x8xbf16, #tpu.memory_space<vmem>>, vector<1x1x8x8xbf16>
    %26 = vector.shape_cast %25 : vector<1x1x8x8xbf16> to vector<8x8xbf16>
    %27 = vector.shape_cast %24 : vector<8x8xbf16> to vector<1x1x8x8xbf16>
    tpu.vector_store %arg10[%c0_22, %c0_23, %c0_24, %c0_25], %27 {strides = array<i32>} : memref<1x4x8x8xbf16, #tpu.memory_space<vmem>>, vector<1x1x8x8xbf16>,
    %28 = vector.extract_strided_slice %17 {offsets = [0, 0], sizes = [8, 8], strides = [1, 1]} : vector<8x32xf32> to vector<8x8xf32>
    %29 = arith.truncf %28 : vector<8x8xf32> to vector<8x8xbf16>
    %c0_26 = arith.constant 0 : index
    %c0_27 = arith.constant 0 : index
    %c0_28 = arith.constant 0 : index
    %c0_29 = arith.constant 0 : index
    %30 = vector.load %arg11[%c0_26, %c0_27, %c0_28, %c0_29] : memref<1x4x8x8xbf16, #tpu.memory_space<vmem>>, vector<1x1x8x8xbf16>
    %31 = vector.shape_cast %30 : vector<1x1x8x8xbf16> to vector<8x8xbf16>
    %32 = vector.shape_cast %29 : vector<8x8xbf16> to vector<1x1x8x8xbf16>
    tpu.vector_store %arg11[%c0_26, %c0_27, %c0_28, %c0_29], %32 {strides = array<i32>} : memref<1x4x8x8xbf16, #tpu.memory_space<vmem>>, vector<1x1x8x8xbf16>,
    %33 = vector.extract_strided_slice %7 {offsets = [0, 8], sizes = [8, 8], strides = [1, 1]} : vector<8x32xf32> to vector<8x8xf32>
    %34 = arith.truncf %33 : vector<8x8xf32> to vector<8x8xbf16>
    %c0_30 = arith.constant 0 : index
    %c1 = arith.constant 1 : index
    %c0_31 = arith.constant 0 : index
    %c0_32 = arith.constant 0 : index
    %35 = vector.load %arg9[%c0_30, %c1, %c0_31, %c0_32] : memref<1x4x8x8xbf16, #tpu.memory_space<vmem>>, vector<1x1x8x8xbf16>
    %36 = vector.shape_cast %35 : vector<1x1x8x8xbf16> to vector<8x8xbf16>
    %37 = vector.shape_cast %34 : vector<8x8xbf16> to vector<1x1x8x8xbf16>
    tpu.vector_store %arg9[%c0_30, %c1, %c0_31, %c0_32], %37 {strides = array<i32>} : memref<1x4x8x8xbf16, #tpu.memory_space<vmem>>, vector<1x1x8x8xbf16>,
    %38 = vector.extract_strided_slice %12 {offsets = [0, 8], sizes = [8, 8], strides = [1, 1]} : vector<8x32xf32> to vector<8x8xf32>
    %39 = arith.truncf %38 : vector<8x8xf32> to vector<8x8xbf16>
    %c0_33 = arith.constant 0 : index
    %c1_34 = arith.constant 1 : index
    %c0_35 = arith.constant 0 : index
    %c0_36 = arith.constant 0 : index
    %40 = vector.load %arg10[%c0_33, %c1_34, %c0_35, %c0_36] : memref<1x4x8x8xbf16, #tpu.memory_space<vmem>>, vector<1x1x8x8xbf16>
    %41 = vector.shape_cast %40 : vector<1x1x8x8xbf16> to vector<8x8xbf16>
    %42 = vector.shape_cast %39 : vector<8x8xbf16> to vector<1x1x8x8xbf16>
    tpu.vector_store %arg10[%c0_33, %c1_34, %c0_35, %c0_36], %42 {strides = array<i32>} : memref<1x4x8x8xbf16, #tpu.memory_space<vmem>>, vector<1x1x8x8xbf16>,
    %43 = vector.extract_strided_slice %17 {offsets = [0, 8], sizes = [8, 8], strides = [1, 1]} : vector<8x32xf32> to vector<8x8xf32>
    %44 = arith.truncf %43 : vector<8x8xf32> to vector<8x8xbf16>
    %c0_37 = arith.constant 0 : index
    %c1_38 = arith.constant 1 : index
    %c0_39 = arith.constant 0 : index
    %c0_40 = arith.constant 0 : index
    %45 = vector.load %arg11[%c0_37, %c1_38, %c0_39, %c0_40] : memref<1x4x8x8xbf16, #tpu.memory_space<vmem>>, vector<1x1x8x8xbf16>
    %46 = vector.shape_cast %45 : vector<1x1x8x8xbf16> to vector<8x8xbf16>
    %47 = vector.shape_cast %44 : vector<8x8xbf16> to vector<1x1x8x8xbf16>
    tpu.vector_store %arg11[%c0_37, %c1_38, %c0_39, %c0_40], %47 {strides = array<i32>} : memref<1x4x8x8xbf16, #tpu.memory_space<vmem>>, vector<1x1x8x8xbf16>,
    %48 = vector.extract_strided_slice %7 {offsets = [0, 16], sizes = [8, 8], strides = [1, 1]} : vector<8x32xf32> to vector<8x8xf32>
    %49 = arith.truncf %48 : vector<8x8xf32> to vector<8x8xbf16>
    %c0_41 = arith.constant 0 : index
    %c2 = arith.constant 2 : index
    %c0_42 = arith.constant 0 : index
    %c0_43 = arith.constant 0 : index
    %50 = vector.load %arg9[%c0_41, %c2, %c0_42, %c0_43] : memref<1x4x8x8xbf16, #tpu.memory_space<vmem>>, vector<1x1x8x8xbf16>
    %51 = vector.shape_cast %50 : vector<1x1x8x8xbf16> to vector<8x8xbf16>
    %52 = vector.shape_cast %49 : vector<8x8xbf16> to vector<1x1x8x8xbf16>
    tpu.vector_store %arg9[%c0_41, %c2, %c0_42, %c0_43], %52 {strides = array<i32>} : memref<1x4x8x8xbf16, #tpu.memory_space<vmem>>, vector<1x1x8x8xbf16>,
    %53 = vector.extract_strided_slice %12 {offsets = [0, 16], sizes = [8, 8], strides = [1, 1]} : vector<8x32xf32> to vector<8x8xf32>
    %54 = arith.truncf %53 : vector<8x8xf32> to vector<8x8xbf16>
    %c0_44 = arith.constant 0 : index
    %c2_45 = arith.constant 2 : index
    %c0_46 = arith.constant 0 : index
    %c0_47 = arith.constant 0 : index
    %55 = vector.load %arg10[%c0_44, %c2_45, %c0_46, %c0_47] : memref<1x4x8x8xbf16, #tpu.memory_space<vmem>>, vector<1x1x8x8xbf16>
    %56 = vector.shape_cast %55 : vector<1x1x8x8xbf16> to vector<8x8xbf16>
    %57 = vector.shape_cast %54 : vector<8x8xbf16> to vector<1x1x8x8xbf16>
    tpu.vector_store %arg10[%c0_44, %c2_45, %c0_46, %c0_47], %57 {strides = array<i32>} : memref<1x4x8x8xbf16, #tpu.memory_space<vmem>>, vector<1x1x8x8xbf16>,
    %58 = vector.extract_strided_slice %17 {offsets = [0, 16], sizes = [8, 8], strides = [1, 1]} : vector<8x32xf32> to vector<8x8xf32>
    %59 = arith.truncf %58 : vector<8x8xf32> to vector<8x8xbf16>
    %c0_48 = arith.constant 0 : index
    %c2_49 = arith.constant 2 : index
    %c0_50 = arith.constant 0 : index
    %c0_51 = arith.constant 0 : index
    %60 = vector.load %arg11[%c0_48, %c2_49, %c0_50, %c0_51] : memref<1x4x8x8xbf16, #tpu.memory_space<vmem>>, vector<1x1x8x8xbf16>
    %61 = vector.shape_cast %60 : vector<1x1x8x8xbf16> to vector<8x8xbf16>
    %62 = vector.shape_cast %59 : vector<8x8xbf16> to vector<1x1x8x8xbf16>
    tpu.vector_store %arg11[%c0_48, %c2_49, %c0_50, %c0_51], %62 {strides = array<i32>} : memref<1x4x8x8xbf16, #tpu.memory_space<vmem>>, vector<1x1x8x8xbf16>,
    %63 = vector.extract_strided_slice %7 {offsets = [0, 24], sizes = [8, 8], strides = [1, 1]} : vector<8x32xf32> to vector<8x8xf32>
    %64 = arith.truncf %63 : vector<8x8xf32> to vector<8x8xbf16>
    %c0_52 = arith.constant 0 : index
    %c3 = arith.constant 3 : index
    %c0_53 = arith.constant 0 : index
    %c0_54 = arith.constant 0 : index
    %65 = vector.load %arg9[%c0_52, %c3, %c0_53, %c0_54] : memref<1x4x8x8xbf16, #tpu.memory_space<vmem>>, vector<1x1x8x8xbf16>
    %66 = vector.shape_cast %65 : vector<1x1x8x8xbf16> to vector<8x8xbf16>
    %67 = vector.shape_cast %64 : vector<8x8xbf16> to vector<1x1x8x8xbf16>
    tpu.vector_store %arg9[%c0_52, %c3, %c0_53, %c0_54], %67 {strides = array<i32>} : memref<1x4x8x8xbf16, #tpu.memory_space<vmem>>, vector<1x1x8x8xbf16>,
    %68 = vector.extract_strided_slice %12 {offsets = [0, 24], sizes = [8, 8], strides = [1, 1]} : vector<8x32xf32> to vector<8x8xf32>
    %69 = arith.truncf %68 : vector<8x8xf32> to vector<8x8xbf16>
    %c0_55 = arith.constant 0 : index
    %c3_56 = arith.constant 3 : index
    %c0_57 = arith.constant 0 : index
    %c0_58 = arith.constant 0 : index
    %70 = vector.load %arg10[%c0_55, %c3_56, %c0_57, %c0_58] : memref<1x4x8x8xbf16, #tpu.memory_space<vmem>>, vector<1x1x8x8xbf16>
    %71 = vector.shape_cast %70 : vector<1x1x8x8xbf16> to vector<8x8xbf16>
    %72 = vector.shape_cast %69 : vector<8x8xbf16> to vector<1x1x8x8xbf16>
    tpu.vector_store %arg10[%c0_55, %c3_56, %c0_57, %c0_58], %72 {strides = array<i32>} : memref<1x4x8x8xbf16, #tpu.memory_space<vmem>>, vector<1x1x8x8xbf16>,
    %73 = vector.extract_strided_slice %17 {offsets = [0, 24], sizes = [8, 8], strides = [1, 1]} : vector<8x32xf32> to vector<8x8xf32>
    %74 = arith.truncf %73 : vector<8x8xf32> to vector<8x8xbf16>
    %c0_59 = arith.constant 0 : index
    %c3_60 = arith.constant 3 : index
    %c0_61 = arith.constant 0 : index
    %c0_62 = arith.constant 0 : index
    %75 = vector.load %arg11[%c0_59, %c3_60, %c0_61, %c0_62] : memref<1x4x8x8xbf16, #tpu.memory_space<vmem>>, vector<1x1x8x8xbf16>
    %76 = vector.shape_cast %75 : vector<1x1x8x8xbf16> to vector<8x8xbf16>
    %77 = vector.shape_cast %74 : vector<8x8xbf16> to vector<1x1x8x8xbf16>
    tpu.vector_store %arg11[%c0_59, %c3_60, %c0_61, %c0_62], %77 {strides = array<i32>} : memref<1x4x8x8xbf16, #tpu.memory_space<vmem>>, vector<1x1x8x8xbf16>,
    return
  }
  func.func @transform_0(%arg0: i32, %arg1: i32) -> (i32, i32, i32) {
    %c0_i32 = arith.constant 0 : i32
    %c0_i32_0 = arith.constant 0 : i32
    return %arg0, %arg1, %c0_i32 : i32, i32, i32
  }
  func.func @transform_1(%arg0: i32, %arg1: i32) -> (i32, i32, i32) {
    %c0_i32 = arith.constant 0 : i32
    %c0_i32_0 = arith.constant 0 : i32
    return %arg0, %arg1, %c0_i32 : i32, i32, i32
  }
  func.func @transform_2(%arg0: i32, %arg1: i32) -> (i32, i32, i32) {
    %c0_i32 = arith.constant 0 : i32
    %c0_i32_0 = arith.constant 0 : i32
    return %arg0, %arg1, %c0_i32 : i32, i32, i32
  }
  func.func @transform_3(%arg0: i32, %arg1: i32) -> (i32, i32) {
    %c0_i32 = arith.constant 0 : i32
    %c0_i32_0 = arith.constant 0 : i32
    %c0_i32_1 = arith.constant 0 : i32
    return %c0_i32, %c0_i32_0 : i32, i32
  }
  func.func @transform_4(%arg0: i32, %arg1: i32) -> (i32, i32) {
    %c0_i32 = arith.constant 0 : i32
    %c0_i32_0 = arith.constant 0 : i32
    %c0_i32_1 = arith.constant 0 : i32
    return %c0_i32, %c0_i32_0 : i32, i32
  }
  func.func @transform_5(%arg0: i32, %arg1: i32) -> (i32, i32) {
    %c0_i32 = arith.constant 0 : i32
    %c0_i32_0 = arith.constant 0 : i32
    %c0_i32_1 = arith.constant 0 : i32
    return %c0_i32, %c0_i32_0 : i32, i32
  }
  func.func @transform_6(%arg0: i32, %arg1: i32) -> (i32, i32) {
    %c0_i32 = arith.constant 0 : i32
    %c0_i32_0 = arith.constant 0 : i32
    %c0_i32_1 = arith.constant 0 : i32
    return %c0_i32, %c0_i32_0 : i32, i32
  }
  func.func @transform_7(%arg0: i32, %arg1: i32) -> (i32, i32, i32, i32) {
    %c0_i32 = arith.constant 0 : i32
    %c0_i32_0 = arith.constant 0 : i32
    %c0_i32_1 = arith.constant 0 : i32
    return %arg0, %c0_i32, %arg1, %c0_i32_0 : i32, i32, i32, i32
  }
  func.func @transform_8(%arg0: i32, %arg1: i32) -> (i32, i32, i32, i32) {
    %c0_i32 = arith.constant 0 : i32
    %c0_i32_0 = arith.constant 0 : i32
    %c0_i32_1 = arith.constant 0 : i32
    return %arg0, %c0_i32, %arg1, %c0_i32_0 : i32, i32, i32, i32
  }
  func.func @transform_9(%arg0: i32, %arg1: i32) -> (i32, i32, i32, i32) {
    %c0_i32 = arith.constant 0 : i32
    %c0_i32_0 = arith.constant 0 : i32
    %c0_i32_1 = arith.constant 0 : i32
    return %arg0, %c0_i32, %arg1, %c0_i32_0 : i32, i32, i32, i32
  }
}

</mosaic_0001>

<llo_original>
// kernel: tpu_custom_call.1
$region0: #{tpu_custom_call.1}
  #allocation0 [shape = 'u32[]', space=smem, size = 0x4, offset = 0x4, fixed_abs, tag = 'smem constant byte address 0x4 - core index']
  #allocation1 [shape = 'u32[144,128]{1,0:T(1,128)}', space=vmem, size = 0x12000, scoped, tag = 'internal scratch']
  %s0 = inlined_call_operand.hbm [shape: f32[2,8,32], index: 0, kind: input, shape index: {}]
  %s1 = inlined_call_operand.hbm [shape: f32[2,8,32], index: 1, kind: input, shape index: {}]
  %s2 = inlined_call_operand.hbm [shape: f32[2,8,32], index: 2, kind: input, shape index: {}]
  %s3 = inlined_call_operand.hbm [shape: bf16[32,32], index: 3, kind: input, shape index: {}]
  %s4 = inlined_call_operand.hbm [shape: f32[1,32], index: 4, kind: input, shape index: {}]
  %s5 = inlined_call_operand.hbm [shape: bf16[32,32], index: 5, kind: input, shape index: {}]
  %s6 = inlined_call_operand.hbm [shape: bf16[32,32], index: 6, kind: input, shape index: {}]
  %s7 = inlined_call_operand.hbm [shape: bf16[2,4,8,8], index: 7, kind: output, shape index: {0}]
  %s8 = inlined_call_operand.hbm [shape: bf16[2,4,8,8], index: 8, kind: output, shape index: {1}]
  %s9 = inlined_call_operand.hbm [shape: bf16[2,4,8,8], index: 9, kind: output, shape index: {2}]
  %10 = xla_tuple %s7, %s8, %s9
  %s11 = sld [smem:[#allocation0]]
  $region105: #{tpu_custom_call.1} parent=0
    _
  %s13 = ssub.s32 1, %s11
  %s14 = scalar_select 0, %s13, %s11
  $region1: #{tpu_custom_call.1} parent=0
    #allocation2 [shape = 'u8[8192]{0}', space=vmem, size = 0x2000, scoped, tag = 'input window, operand 0']
    #allocation3 [shape = 's32[2]{0}', space=sflag, size = 0x8, scoped, tag = 'scoped memory for tpu_custom_call.1']
    #allocation4 [shape = 's32[2]{0}', space=sflag, size = 0x8, scoped, tag = 'scoped memory for tpu_custom_call.1']
    #allocation5 [shape = 'u8[8192]{0}', space=vmem, size = 0x2000, scoped, tag = 'input window, operand 1']
    #allocation6 [shape = 's32[2]{0}', space=sflag, size = 0x8, scoped, tag = 'scoped memory for tpu_custom_call.1']
    #allocation7 [shape = 'u8[8192]{0}', space=vmem, size = 0x2000, scoped, tag = 'input window, operand 2']
    #allocation8 [shape = 'u8[8192]{0}', space=vmem, size = 0x2000, scoped, tag = 'input window, operand 3, single buffered']
    #allocation9 [shape = 's32[1]{0}', space=sflag, size = 0x4, scoped, tag = 'scoped memory for tpu_custom_call.1']
    #allocation10 [shape = 'u8[512]{0}', space=vmem, size = 0x400, scoped, tag = 'input window, operand 4, single buffered']
    #allocation11 [shape = 'u8[8192]{0}', space=vmem, size = 0x2000, scoped, tag = 'input window, operand 5, single buffered']
    #allocation12 [shape = 's32[1]{0}', space=sflag, size = 0x4, scoped, tag = 'scoped memory for tpu_custom_call.1']
    #allocation13 [shape = 'u8[8192]{0}', space=vmem, size = 0x2000, scoped, tag = 'input window, operand 6, single buffered']
    #allocation14 [shape = 'u8[16384]{0}', space=vmem, size = 0x4000, scoped, tag = 'output window, operand 0']
    #allocation15 [shape = 'u8[16384]{0}', space=vmem, size = 0x4000, scoped, tag = 'output window, operand 1']
    #allocation16 [shape = 's32[2]{0}', space=sflag, size = 0x8, scoped, tag = 'scoped memory for tpu_custom_call.1']
    #allocation17 [shape = 'u8[16384]{0}', space=vmem, size = 0x4000, scoped, tag = 'output window, operand 2']
    %15 = vsyncpa [#allocation3], 0
    %s16 = scalar_lea.sflag [#allocation3], 1
    %17 = vsyncpa %s16, 0
    %18 = vsyncpa [#allocation6], 0
    %s19 = scalar_lea.sflag [#allocation6], 1
    %20 = vsyncpa %s19, 0
    %21 = vsyncpa [#allocation9], 0
    %22 = vsyncpa [#allocation12], 0
    %23 = vsyncpa [#allocation4], 0
    %s24 = scalar_lea.sflag [#allocation4], 1
    %25 = vsyncpa %s24, 0
    %26 = vsyncpa [#allocation16], 0
    %s27 = scalar_lea.sflag [#allocation16], 1
    %28 = vsyncpa %s27, 0
    loop: start=0, step=1, limit=4
    $region2: #{tpu_custom_call.1} parent=1 // loop_pre_header
      _
    $region3: #{tpu_custom_call.1} parent=1 // loop_header
      %s30 = sphi 0, %s34
      %p31 = scmp.ge.s32.totalorder %s30, 4
      %s37 = sphi 0, %s49
      %s38 = sphi 0, %s45
      %s39 = sphi 0, %s37
      %s40 = sphi 0, %s38
      %s41 = sphi 0, %s39
      %s42 = sphi 0, %s40
      %s54 = sphi 0, %s56
      %s57 = sphi 0, %s54
      %s58 = sphi 0, %s57
      %s74 = sphi 0, %s58
      %s82 = sphi 0, %s84
      %s85 = sphi 0, %s82
      %s86 = sphi 0, %s85
      %s102 = sphi 0, %s86
      %s110 = sphi 0, %s112
      %s113 = sphi 0, %s110
      %s114 = sphi 0, %s113
      %s130 = sphi 0, %s114
      %s134 = sphi 0, %s134
      %s136 = sphi 0, %s134
      %s137 = sphi 0, %s136
      %s151 = sphi 0, %s137
      %s155 = sphi 0, %s155
      %s157 = sphi 0, %s155
      %s158 = sphi 0, %s157
      %s172 = sphi 0, %s158
      %s176 = sphi 0, %s176
      %s178 = sphi 0, %s176
      %s179 = sphi 0, %s178
      %s193 = sphi 0, %s179
      %s197 = sphi 0, %s197
      %s199 = sphi 0, %s197
      %s200 = sphi 0, %s199
      %s214 = sphi 0, %s200
      %s222 = sphi 0, %s224
      %s225 = sphi 0, %s222
      %s226 = sphi 0, %s225
      %s242 = sphi 0, %s226
      %s250 = sphi 0, %s252
      %s253 = sphi 0, %s250
      %s254 = sphi 0, %s253
      %s270 = sphi 0, %s254
      %s278 = sphi 0, %s280
      %s281 = sphi 0, %s278
      %s282 = sphi 0, %s281
      %s298 = sphi 0, %s282
    $region4: #{tpu_custom_call.1} parent=1 // loop_header_branch
      %33 = sbr.rel (%p31) target = $region8
    $region5: #{tpu_custom_call.1} parent=1 // loop_body
      %s35 = ssub.s32 %s30, 1
      %s36 = ssub.s32 %s30, 2
      %s43 = sadd.s32 1, %s38
      %p44 = scmp.ge.s32.totalorder %s43, 1
      %s45 = scalar_select %p44, 0, %s43
      %s46 = sadd.s32 1, %s37
      %s47 = scalar_select %p44, %s46, %s37
      %p48 = scmp.ge.s32.totalorder %s47, 2
      %s49 = scalar_select %p48, 0, %s47
      %s50 = ssub.s32 %s37, %s49
      %s51 = ssub.s32 %s38, %s45
      %s52 = sor.u32 %s50, %s51
      %p53 = scmp.eq.s32.totalorder %s52, 0
      %s55 = sadd.s32 %s54, 1
      %s56 = scalar_select %p53, %s54, %s55
      %p59 = pneg %p53
      %p60 = scmp.eq.s32.totalorder %s30, 1
      %p61 = por %p59, %p60
      %p62 = scmp.ne.s32.totalorder %s54, %s57
      %p63 = scmp.eq.s32.totalorder %s30, 0
      %p64 = por %p62, %p63
      %p65 = scmp.ne.s32.totalorder %s54, %s57
      %p66 = scmp.eq.s32.totalorder %s35, 1
      %p67 = por %p65, %p66
      %p68 = scmp.ne.s32.totalorder %s57, %s58
      %p69 = scmp.eq.s32.totalorder %s35, 0
      %p70 = por %p68, %p69
      %p71 = scmp.ne.s32.totalorder %s57, %s58
      %p72 = scmp.eq.s32.totalorder %s36, 1
      %p73 = por %p71, %p72
      %p75 = scmp.ne.s32.totalorder %s58, %s74
      %p76 = scmp.eq.s32.totalorder %s36, 0
      %p77 = por %p75, %p76
      %s78 = ssub.s32 %s37, %s49
      %s79 = ssub.s32 %s38, %s45
      %s80 = sor.u32 %s78, %s79
      %p81 = scmp.eq.s32.totalorder %s80, 0
      %s83 = sadd.s32 %s82, 1
      %s84 = scalar_select %p81, %s82, %s83
      %p87 = pneg %p81
      %p88 = scmp.eq.s32.totalorder %s30, 1
      %p89 = por %p87, %p88
      %p90 = scmp.ne.s32.totalorder %s82, %s85
      %p91 = scmp.eq.s32.totalorder %s30, 0
      %p92 = por %p90, %p91
      %p93 = scmp.ne.s32.totalorder %s82, %s85
      %p94 = scmp.eq.s32.totalorder %s35, 1
      %p95 = por %p93, %p94
      %p96 = scmp.ne.s32.totalorder %s85, %s86
      %p97 = scmp.eq.s32.totalorder %s35, 0
      %p98 = por %p96, %p97
      %p99 = scmp.ne.s32.totalorder %s85, %s86
      %p100 = scmp.eq.s32.totalorder %s36, 1
      %p101 = por %p99, %p100
      %p103 = scmp.ne.s32.totalorder %s86, %s102
      %p104 = scmp.eq.s32.totalorder %s36, 0
      %p105 = por %p103, %p104
      %s106 = ssub.s32 %s37, %s49
      %s107 = ssub.s32 %s38, %s45
      %s108 = sor.u32 %s106, %s107
      %p109 = scmp.eq.s32.totalorder %s108, 0
      %s111 = sadd.s32 %s110, 1
      %s112 = scalar_select %p109, %s110, %s111
      %p115 = pneg %p109
      %p116 = scmp.eq.s32.totalorder %s30, 1
      %p117 = por %p115, %p116
      %p118 = scmp.ne.s32.totalorder %s110, %s113
      %p119 = scmp.eq.s32.totalorder %s30, 0
      %p120 = por %p118, %p119
      %p121 = scmp.ne.s32.totalorder %s110, %s113
      %p122 = scmp.eq.s32.totalorder %s35, 1
      %p123 = por %p121, %p122
      %p124 = scmp.ne.s32.totalorder %s113, %s114
      %p125 = scmp.eq.s32.totalorder %s35, 0
      %p126 = por %p124, %p125
      %p127 = scmp.ne.s32.totalorder %s113, %s114
      %p128 = scmp.eq.s32.totalorder %s36, 1
      %p129 = por %p127, %p128
      %p131 = scmp.ne.s32.totalorder %s114, %s130
      %p132 = scmp.eq.s32.totalorder %s36, 0
      %p133 = por %p131, %p132
      %s135 = sadd.s32 %s134, 1
      %p138 = scmp.eq.s32.totalorder %s30, 1
      %p139 = scmp.ne.s32.totalorder %s134, %s136
      %p140 = scmp.eq.s32.totalorder %s30, 0
      %p141 = por %p139, %p140
      %p142 = scmp.ne.s32.totalorder %s134, %s136
      %p143 = scmp.eq.s32.totalorder %s35, 1
      %p144 = por %p142, %p143
      %p145 = scmp.ne.s32.totalorder %s136, %s137
      %p146 = scmp.eq.s32.totalorder %s35, 0
      %p147 = por %p145, %p146
      %p148 = scmp.ne.s32.totalorder %s136, %s137
      %p149 = scmp.eq.s32.totalorder %s36, 1
      %p150 = por %p148, %p149
      %p152 = scmp.ne.s32.totalorder %s137, %s151
      %p153 = scmp.eq.s32.totalorder %s36, 0
      %p154 = por %p152, %p153
      %s156 = sadd.s32 %s155, 1
      %p159 = scmp.eq.s32.totalorder %s30, 1
      %p160 = scmp.ne.s32.totalorder %s155, %s157
      %p161 = scmp.eq.s32.totalorder %s30, 0
      %p162 = por %p160, %p161
      %p163 = scmp.ne.s32.totalorder %s155, %s157
      %p164 = scmp.eq.s32.totalorder %s35, 1
      %p165 = por %p163, %p164
      %p166 = scmp.ne.s32.totalorder %s157, %s158
      %p167 = scmp.eq.s32.totalorder %s35, 0
      %p168 = por %p166, %p167
      %p169 = scmp.ne.s32.totalorder %s157, %s158
      %p170 = scmp.eq.s32.totalorder %s36, 1
      %p171 = por %p169, %p170
      %p173 = scmp.ne.s32.totalorder %s158, %s172
      %p174 = scmp.eq.s32.totalorder %s36, 0
      %p175 = por %p173, %p174
      %s177 = sadd.s32 %s176, 1
      %p180 = scmp.eq.s32.totalorder %s30, 1
      %p181 = scmp.ne.s32.totalorder %s176, %s178
      %p182 = scmp.eq.s32.totalorder %s30, 0
      %p183 = por %p181, %p182
      %p184 = scmp.ne.s32.totalorder %s176, %s178
      %p185 = scmp.eq.s32.totalorder %s35, 1
      %p186 = por %p184, %p185
      %p187 = scmp.ne.s32.totalorder %s178, %s179
      %p188 = scmp.eq.s32.totalorder %s35, 0
      %p189 = por %p187, %p188
      %p190 = scmp.ne.s32.totalorder %s178, %s179
      %p191 = scmp.eq.s32.totalorder %s36, 1
      %p192 = por %p190, %p191
      %p194 = scmp.ne.s32.totalorder %s179, %s193
      %p195 = scmp.eq.s32.totalorder %s36, 0
      %p196 = por %p194, %p195
      %s198 = sadd.s32 %s197, 1
      %p201 = scmp.eq.s32.totalorder %s30, 1
      %p202 = scmp.ne.s32.totalorder %s197, %s199
      %p203 = scmp.eq.s32.totalorder %s30, 0
      %p204 = por %p202, %p203
      %p205 = scmp.ne.s32.totalorder %s197, %s199
      %p206 = scmp.eq.s32.totalorder %s35, 1
      %p207 = por %p205, %p206
      %p208 = scmp.ne.s32.totalorder %s199, %s200
      %p209 = scmp.eq.s32.totalorder %s35, 0
      %p210 = por %p208, %p209
      %p211 = scmp.ne.s32.totalorder %s199, %s200
      %p212 = scmp.eq.s32.totalorder %s36, 1
      %p213 = por %p211, %p212
      %p215 = scmp.ne.s32.totalorder %s200, %s214
      %p216 = scmp.eq.s32.totalorder %s36, 0
      %p217 = por %p215, %p216
      %s218 = ssub.s32 %s37, %s49
      %s219 = ssub.s32 %s38, %s45
      %s220 = sor.u32 %s218, %s219
      %p221 = scmp.eq.s32.totalorder %s220, 0
      %s223 = sadd.s32 %s222, 1
      %s224 = scalar_select %p221, %s222, %s223
      %p227 = pneg %p221
      %p228 = scmp.eq.s32.totalorder %s30, 1
      %p229 = por %p227, %p228
      %p230 = scmp.ne.s32.totalorder %s222, %s225
      %p231 = scmp.eq.s32.totalorder %s30, 0
      %p232 = por %p230, %p231
      %p233 = scmp.ne.s32.totalorder %s222, %s225
      %p234 = scmp.eq.s32.totalorder %s35, 1
      %p235 = por %p233, %p234
      %p236 = scmp.ne.s32.totalorder %s225, %s226
      %p237 = scmp.eq.s32.totalorder %s35, 0
      %p238 = por %p236, %p237
      %p239 = scmp.ne.s32.totalorder %s225, %s226
      %p240 = scmp.eq.s32.totalorder %s36, 1
      %p241 = por %p239, %p240
      %p243 = scmp.ne.s32.totalorder %s226, %s242
      %p244 = scmp.eq.s32.totalorder %s36, 0
      %p245 = por %p243, %p244
      %s246 = ssub.s32 %s37, %s49
      %s247 = ssub.s32 %s38, %s45
      %s248 = sor.u32 %s246, %s247
      %p249 = scmp.eq.s32.totalorder %s248, 0
      %s251 = sadd.s32 %s250, 1
      %s252 = scalar_select %p249, %s250, %s251
      %p255 = pneg %p249
      %p256 = scmp.eq.s32.totalorder %s30, 1
      %p257 = por %p255, %p256
      %p258 = scmp.ne.s32.totalorder %s250, %s253
      %p259 = scmp.eq.s32.totalorder %s30, 0
      %p260 = por %p258, %p259
      %p261 = scmp.ne.s32.totalorder %s250, %s253
      %p262 = scmp.eq.s32.totalorder %s35, 1
      %p263 = por %p261, %p262
      %p264 = scmp.ne.s32.totalorder %s253, %s254
      %p265 = scmp.eq.s32.totalorder %s35, 0
      %p266 = por %p264, %p265
      %p267 = scmp.ne.s32.totalorder %s253, %s254
      %p268 = scmp.eq.s32.totalorder %s36, 1
      %p269 = por %p267, %p268
      %p271 = scmp.ne.s32.totalorder %s254, %s270
      %p272 = scmp.eq.s32.totalorder %s36, 0
      %p273 = por %p271, %p272
      %s274 = ssub.s32 %s37, %s49
      %s275 = ssub.s32 %s38, %s45
      %s276 = sor.u32 %s274, %s275
      %p277 = scmp.eq.s32.totalorder %s276, 0
      %s279 = sadd.s32 %s278, 1
      %s280 = scalar_select %p277, %s278, %s279
      %p283 = pneg %p277
      %p284 = scmp.eq.s32.totalorder %s30, 1
      %p285 = por %p283, %p284
      %p286 = scmp.ne.s32.totalorder %s278, %s281
      %p287 = scmp.eq.s32.totalorder %s30, 0
      %p288 = por %p286, %p287
      %p289 = scmp.ne.s32.totalorder %s278, %s281
      %p290 = scmp.eq.s32.totalorder %s35, 1
      %p291 = por %p289, %p290
      %p292 = scmp.ne.s32.totalorder %s281, %s282
      %p293 = scmp.eq.s32.totalorder %s35, 0
      %p294 = por %p292, %p293
      %p295 = scmp.ne.s32.totalorder %s281, %s282
      %p296 = scmp.eq.s32.totalorder %s36, 1
      %p297 = por %p295, %p296
      %p299 = scmp.ne.s32.totalorder %s282, %s298
      %p300 = scmp.eq.s32.totalorder %s36, 0
      %p301 = por %p299, %p300
      %p302 = scmp.le.s32.totalorder 1, %s30
      %p303 = scmp.lt.s32.totalorder %s30, 3
      %p304 = pnand %p302, %p303
      %p305 = pneg %p304
      // Predicated region
      $region9: #{tpu_custom_call.1} parent=5 // pred_check
        _
      $region10: #{tpu_custom_call.1} parent=5 // pred_check_branch
        %307 = sbr.rel (%p304) target = $region12
      $region11: #{tpu_custom_call.1} parent=5 // pred_region
        %s308 = ssub.s32 %s30, 1
        // Predicated region
        $region13: #{tpu_custom_call.1} parent=11 // pred_check
          %p309 = pneg %p147
        $region14: #{tpu_custom_call.1} parent=11 // pred_check_branch
          %311 = sbr.rel (%p309) target = $region16
        $region15: #{tpu_custom_call.1} parent=11 // pred_region
          %s313 = ssub.s32 256, 256
          %314 = vsyncadd [#allocation9], %s313
          %s315 = sshll.u32 [#allocation8], 4
          %s316 = int_to_ptr.vmem [resolvable:$true] %s315
          %321 = dma.hbm_to_vmem [thread:$0]  %s3, 256, %s316, [#allocation9], 64, 64, 4
        $region16: #{tpu_custom_call.1} parent=11 // pred_fallthru
          _
        // Predicated region
        $region17: #{tpu_custom_call.1} parent=11 // pred_check
          %p322 = pneg %p168
        $region18: #{tpu_custom_call.1} parent=11 // pred_check_branch
          %324 = sbr.rel (%p322) target = $region20
        $region19: #{tpu_custom_call.1} parent=11 // pred_region
          %s326 = ssub.s32 16, 16
          %327 = vsyncadd [#allocation9], %s326
          %s329 = sshll.u32 [#allocation10], 4
          %s330 = int_to_ptr.vmem [resolvable:$true] %s329
          %332 = dma.hbm_to_vmem [thread:$0]  %s4, 16, %s330, [#allocation9]
        $region20: #{tpu_custom_call.1} parent=11 // pred_fallthru
          _
        // Predicated region
        $region21: #{tpu_custom_call.1} parent=11 // pred_check
          %p333 = pneg %p189
        $region22: #{tpu_custom_call.1} parent=11 // pred_check_branch
          %335 = sbr.rel (%p333) target = $region24
        $region23: #{tpu_custom_call.1} parent=11 // pred_region
          %s337 = ssub.s32 256, 256
          %338 = vsyncadd [#allocation12], %s337
          %s339 = sshll.u32 [#allocation11], 4
          %s340 = int_to_ptr.vmem [resolvable:$true] %s339
          %345 = dma.hbm_to_vmem [thread:$0]  %s5, 256, %s340, [#allocation12], 64, 64, 4
        $region24: #{tpu_custom_call.1} parent=11 // pred_fallthru
          _
        // Predicated region
        $region25: #{tpu_custom_call.1} parent=11 // pred_check
          %p346 = pneg %p210
        $region26: #{tpu_custom_call.1} parent=11 // pred_check_branch
          %348 = sbr.rel (%p346) target = $region28
        $region27: #{tpu_custom_call.1} parent=11 // pred_region
          %s350 = ssub.s32 256, 256
          %351 = vsyncadd [#allocation12], %s350
          %s352 = sshll.u32 [#allocation13], 4
          %s353 = int_to_ptr.vmem [resolvable:$true] %s352
          %358 = dma.hbm_to_vmem [thread:$0]  %s6, 256, %s353, [#allocation12], 64, 64, 4
        $region28: #{tpu_custom_call.1} parent=11 // pred_fallthru
          _
      $region12: #{tpu_custom_call.1} parent=5 // pred_fallthru
        _
      %p359 = scmp.lt.s32.totalorder %s30, 2
      // Predicated region
      $region29: #{tpu_custom_call.1} parent=5 // pred_check
        %p360 = pneg %p359
      $region30: #{tpu_custom_call.1} parent=5 // pred_check_branch
        %362 = sbr.rel (%p360) target = $region32
      $region31: #{tpu_custom_call.1} parent=5 // pred_region
        // Predicated region
        $region33: #{tpu_custom_call.1} parent=31 // pred_check
          %p363 = pneg %p64
        $region34: #{tpu_custom_call.1} parent=31 // pred_check_branch
          %365 = sbr.rel (%p363) target = $region36
        $region35: #{tpu_custom_call.1} parent=31 // pred_region
          %s366 = sand.u32 %s54, 1
          %s367 = scalar_lea.sflag [#allocation3], %s366
          %s368 = sand.u32 %s54, 1
          %s369 = smul.addr %s368, 8
          %s370 = scalar_lea.vmem [#allocation2], %s369
          %s372 = ssub.s32 128, 128
          %373 = vsyncadd %s367, %s372
          %s374 = sadd.s32 %s38, %s37
          %s375 = smul.addr %s374, 128
          %s376 = scalar_lea.hbm %s0, %s375
          %s378 = sshll.u32 %s370, 4
          %s379 = int_to_ptr.vmem [resolvable:$true] %s378
          %381 = dma.hbm_to_vmem [thread:$0]  %s376, 128, %s379, %s367
        $region36: #{tpu_custom_call.1} parent=31 // pred_fallthru
          _
        // Predicated region
        $region37: #{tpu_custom_call.1} parent=31 // pred_check
          %p382 = pneg %p92
        $region38: #{tpu_custom_call.1} parent=31 // pred_check_branch
          %384 = sbr.rel (%p382) target = $region40
        $region39: #{tpu_custom_call.1} parent=31 // pred_region
          %s385 = sand.u32 %s30, 1
          %s386 = scalar_lea.sflag [#allocation6], %s385
          %s387 = sand.u32 %s82, 1
          %s388 = smul.addr %s387, 8
          %s389 = scalar_lea.vmem [#allocation5], %s388
          %s391 = ssub.s32 128, 128
          %392 = vsyncadd %s386, %s391
          %s393 = sadd.s32 %s38, %s37
          %s394 = smul.addr %s393, 128
          %s395 = scalar_lea.hbm %s1, %s394
          %s397 = sshll.u32 %s389, 4
          %s398 = int_to_ptr.vmem [resolvable:$true] %s397
          %400 = dma.hbm_to_vmem [thread:$0]  %s395, 128, %s398, %s386
        $region40: #{tpu_custom_call.1} parent=31 // pred_fallthru
          _
        // Predicated region
        $region41: #{tpu_custom_call.1} parent=31 // pred_check
          %p401 = pneg %p120
        $region42: #{tpu_custom_call.1} parent=31 // pred_check_branch
          %403 = sbr.rel (%p401) target = $region44
        $region43: #{tpu_custom_call.1} parent=31 // pred_region
          %s404 = sand.u32 %s30, 1
          %s405 = scalar_lea.sflag [#allocation6], %s404
          %s406 = sand.u32 %s110, 1
          %s407 = smul.addr %s406, 8
          %s408 = scalar_lea.vmem [#allocation7], %s407
          %s410 = ssub.s32 128, 128
          %411 = vsyncadd %s405, %s410
          %s412 = sadd.s32 %s38, %s37
          %s413 = smul.addr %s412, 128
          %s414 = scalar_lea.hbm %s2, %s413
          %s416 = sshll.u32 %s408, 4
          %s417 = int_to_ptr.vmem [resolvable:$true] %s416
          %419 = dma.hbm_to_vmem [thread:$0]  %s414, 128, %s417, %s405
        $region44: #{tpu_custom_call.1} parent=31 // pred_fallthru
          _
      $region32: #{tpu_custom_call.1} parent=5 // pred_fallthru
        _
      %p420 = scmp.le.s32.totalorder 1, %s30
      %p421 = scmp.lt.s32.totalorder %s30, 3
      %p422 = pnand %p420, %p421
      %p423 = pneg %p422
      // Predicated region
      $region45: #{tpu_custom_call.1} parent=5 // pred_check
        _
      $region46: #{tpu_custom_call.1} parent=5 // pred_check_branch
        %425 = sbr.rel (%p422) target = $region48
      $region47: #{tpu_custom_call.1} parent=5 // pred_region
        %s426 = ssub.s32 %s30, 1
        %s427 = sand.u32 %s57, 1
        %s428 = scalar_lea.sflag [#allocation3], %s427
        %s429 = sand.u32 %s57, 1
        %s430 = smul.addr %s429, 8
        %s431 = scalar_lea.vmem [#allocation2], %s430
        // Predicated region
        $region49: #{tpu_custom_call.1} parent=47 // pred_check
          %p432 = pneg %p70
        $region50: #{tpu_custom_call.1} parent=47 // pred_check_branch
          %434 = sbr.rel (%p432) target = $region52
        $region51: #{tpu_custom_call.1} parent=47 // pred_region
          %435 = dma.done %s428, 128
        $region52: #{tpu_custom_call.1} parent=47 // pred_fallthru
          _
        %s436 = sand.u32 %s35, 1
        %s437 = scalar_lea.sflag [#allocation6], %s436
        %s438 = sand.u32 %s85, 1
        %s439 = smul.addr %s438, 8
        %s440 = scalar_lea.vmem [#allocation5], %s439
        // Predicated region
        $region53: #{tpu_custom_call.1} parent=47 // pred_check
          %p441 = pneg %p98
        $region54: #{tpu_custom_call.1} parent=47 // pred_check_branch
          %443 = sbr.rel (%p441) target = $region56
        $region55: #{tpu_custom_call.1} parent=47 // pred_region
          %444 = dma.done %s437, 128
        $region56: #{tpu_custom_call.1} parent=47 // pred_fallthru
          _
        %s445 = sand.u32 %s35, 1
        %s446 = scalar_lea.sflag [#allocation6], %s445
        %s447 = sand.u32 %s113, 1
        %s448 = smul.addr %s447, 8
        %s449 = scalar_lea.vmem [#allocation7], %s448
        // Predicated region
        $region57: #{tpu_custom_call.1} parent=47 // pred_check
          %p450 = pneg %p126
        $region58: #{tpu_custom_call.1} parent=47 // pred_check_branch
          %452 = sbr.rel (%p450) target = $region60
        $region59: #{tpu_custom_call.1} parent=47 // pred_region
          %453 = dma.done %s446, 128
        $region60: #{tpu_custom_call.1} parent=47 // pred_fallthru
          _
        // Predicated region
        $region61: #{tpu_custom_call.1} parent=47 // pred_check
          %p454 = pneg %p147
        $region62: #{tpu_custom_call.1} parent=47 // pred_check_branch
          %456 = sbr.rel (%p454) target = $region64
        $region63: #{tpu_custom_call.1} parent=47 // pred_region
          %457 = dma.done [#allocation9], 256
        $region64: #{tpu_custom_call.1} parent=47 // pred_fallthru
          _
        // Predicated region
        $region65: #{tpu_custom_call.1} parent=47 // pred_check
          %p458 = pneg %p168
        $region66: #{tpu_custom_call.1} parent=47 // pred_check_branch
          %460 = sbr.rel (%p458) target = $region68
        $region67: #{tpu_custom_call.1} parent=47 // pred_region
          %461 = dma.done [#allocation9], 16
        $region68: #{tpu_custom_call.1} parent=47 // pred_fallthru
          _
        // Predicated region
        $region69: #{tpu_custom_call.1} parent=47 // pred_check
          %p462 = pneg %p189
        $region70: #{tpu_custom_call.1} parent=47 // pred_check_branch
          %464 = sbr.rel (%p462) target = $region72
        $region71: #{tpu_custom_call.1} parent=47 // pred_region
          %465 = dma.done [#allocation12], 256
        $region72: #{tpu_custom_call.1} parent=47 // pred_fallthru
          _
        // Predicated region
        $region73: #{tpu_custom_call.1} parent=47 // pred_check
          %p466 = pneg %p210
        $region74: #{tpu_custom_call.1} parent=47 // pred_check_branch
          %468 = sbr.rel (%p466) target = $region76
        $region75: #{tpu_custom_call.1} parent=47 // pred_region
          %469 = dma.done [#allocation12], 256
        $region76: #{tpu_custom_call.1} parent=47 // pred_fallthru
          _
        %s470 = sand.u32 %s57, 1
        %s471 = scalar_lea.sflag [#allocation3], %s470
        %s472 = sand.u32 %s57, 1
        %s473 = smul.addr %s472, 8
        %s474 = scalar_lea.vmem [#allocation2], %s473
        %p475 = pneg %p70
        %p476 = pneg %p67
        %s477 = sand.u32 %s35, 1
        %s478 = scalar_lea.sflag [#allocation6], %s477
        %s479 = sand.u32 %s85, 1
        %s480 = smul.addr %s479, 8
        %s481 = scalar_lea.vmem [#allocation5], %s480
        %p482 = pneg %p98
        %p483 = pneg %p95
        %s484 = sand.u32 %s35, 1
        %s485 = scalar_lea.sflag [#allocation6], %s484
        %s486 = sand.u32 %s113, 1
        %s487 = smul.addr %s486, 8
        %s488 = scalar_lea.vmem [#allocation7], %s487
        %p489 = pneg %p126
        %p490 = pneg %p123
        %p491 = pneg %p147
        %p492 = pneg %p144
        %p493 = pneg %p168
        %p494 = pneg %p165
        %p495 = pneg %p189
        %p496 = pneg %p186
        %p497 = pneg %p210
        %p498 = pneg %p207
        %p499 = pneg %p238
        %p500 = pneg %p235
        %s501 = sand.u32 %s225, 1
        %s502 = scalar_lea.sflag [#allocation4], %s501
        %s503 = sand.u32 %s225, 1
        %s504 = smul.addr %s503, 16
        %s505 = scalar_lea.vmem [#allocation14], %s504
        %p506 = pneg %p266
        %p507 = pneg %p263
        %s508 = sand.u32 %s35, 1
        %s509 = scalar_lea.sflag [#allocation16], %s508
        %s510 = sand.u32 %s253, 1
        %s511 = smul.addr %s510, 16
        %s512 = scalar_lea.vmem [#allocation15], %s511
        %p513 = pneg %p294
        %p514 = pneg %p291
        %s515 = sand.u32 %s35, 1
        %s516 = scalar_lea.sflag [#allocation16], %s515
        %s517 = sand.u32 %s281, 1
        %s518 = smul.addr %s517, 16
        %s519 = scalar_lea.vmem [#allocation17], %s518
        %v521 = vld [vmem:[%s431] sm:$0xff]
        %v522 = vpack.c.bf16 %v521, %v521
        %v523 = vld [vmem:[#allocation8] sm:$0xf]
        %v524 = vld [vmem:[#allocation8 + $0x4] sm:$0xf]
        %v525 = vld [vmem:[#allocation8 + $0x8] sm:$0xf]
        %v526 = vld [vmem:[#allocation8 + $0xc] sm:$0xf]
        %v527 = vld [vmem:[#allocation10] sm:$0x1]
        %v529 = vlaneseq
        %v530 = vshrl.u32 %v529, 7
        %v531 = vsub.s32 0, %v530
        %v532 = vrot.slane %v527, %v531
        %v538 = vunpack.c.l.b16 %v523
        %v539 = vunpack.c.l.b16 %v524
        %v540 = vunpack.c.l.b16 %v525
        %v541 = vunpack.c.l.b16 %v526
        %v542 = vpack.c.b16 %v539, %v538
        %v543 = vpack.c.b16 %v541, %v540
        %vm546 = vcmask 261120
        %v548 = vsel %vm546, %v522, 0
        %550 = vmatprep.subr.bf16.mxu0 0
        %551 = vmatpush1.bf16.msra.mxu0 %v542
        %552 = vmatprep.subr.bf16.mxu0 0
        %553 = vmatpush1.bf16.msra.mxu0 %v543
        %554 = vmatprep.subr.bf16.mxu0 0
        %555 = vmatpush1.bf16.msra.mxu0 0
        %556 = vmatprep.subr.bf16.mxu0 0
        %557 = vmatpush1.bf16.msra.mxu0 0
        %558 = vmatprep.subr.bf16.mxu0 0
        %559 = vmatpush1.bf16.msra.mxu0 0
        %560 = vmatprep.subr.bf16.mxu0 0
        %561 = vmatpush1.bf16.msra.mxu0 0
        %562 = vmatprep.subr.bf16.mxu0 0
        %563 = vmatpush1.bf16.msra.mxu0 0
        %564 = vmatprep.subr.bf16.mxu0 0
        %565 = vmatpush1.bf16.msra.mxu0 0
        %566 = vmatprep.subr.bf16.mxu0 0
        %567 = vmatpush1.bf16.msra.mxu0 0
        %568 = vmatprep.subr.bf16.mxu0 0
        %569 = vmatpush1.bf16.msra.mxu0 0
        %570 = vmatprep.subr.bf16.mxu0 0
        %571 = vmatpush1.bf16.msra.mxu0 0
        %572 = vmatprep.subr.bf16.mxu0 0
        %573 = vmatpush1.bf16.msra.mxu0 0
        %574 = vmatprep.subr.bf16.mxu0 0
        %575 = vmatpush1.bf16.msra.mxu0 0
        %576 = vmatprep.subr.bf16.mxu0 0
        %577 = vmatpush1.bf16.msra.mxu0 0
        %578 = vmatprep.subr.bf16.mxu0 0
        %579 = vmatpush1.bf16.msra.mxu0 0
        %580 = vmatprep.subr.bf16.mxu0 0
        %581 = vmatpush1.bf16.msra.mxu0 0
        %582 = vmatprep.mubr.bf16.mxu0 0
        %583 = vmatmul.mubr.bf16.gmra.mrb[0].mxu0 %v548
        %v584 = vpop.f32.mrb[0].mxu0
        %v585 = vadd.f32 %v532, %v584
        %v586 = vpop.f32.mrb[0].mxu0
        %v587 = vpop.f32.mrb[0].mxu0
        %v588 = vpop.f32.mrb[0].mxu0
        %589 = vdwg.mxu0
        %v590 = vld [vmem:[%s440] sm:$0xff]
        %v591 = vpack.c.bf16 %v590, %v590
        %v592 = vld [vmem:[#allocation11] sm:$0xf]
        %v593 = vld [vmem:[#allocation11 + $0x4] sm:$0xf]
        %v594 = vld [vmem:[#allocation11 + $0x8] sm:$0xf]
        %v595 = vld [vmem:[#allocation11 + $0xc] sm:$0xf]
        %v600 = vunpack.c.l.b16 %v592
        %v601 = vunpack.c.l.b16 %v593
        %v602 = vunpack.c.l.b16 %v594
        %v603 = vunpack.c.l.b16 %v595
        %v604 = vpack.c.b16 %v601, %v600
        %v605 = vpack.c.b16 %v603, %v602
        %v609 = vsel %vm546, %v591, 0
        %611 = vmatprep.subr.bf16.mxu0 0
        %612 = vmatpush1.bf16.msra.mxu0 %v604
        %613 = vmatprep.subr.bf16.mxu0 0
        %614 = vmatpush1.bf16.msra.mxu0 %v605
        %615 = vmatprep.subr.bf16.mxu0 0
        %616 = vmatpush1.bf16.msra.mxu0 0
        %617 = vmatprep.subr.bf16.mxu0 0
        %618 = vmatpush1.bf16.msra.mxu0 0
        %619 = vmatprep.subr.bf16.mxu0 0
        %620 = vmatpush1.bf16.msra.mxu0 0
        %621 = vmatprep.subr.bf16.mxu0 0
        %622 = vmatpush1.bf16.msra.mxu0 0
        %623 = vmatprep.subr.bf16.mxu0 0
        %624 = vmatpush1.bf16.msra.mxu0 0
        %625 = vmatprep.subr.bf16.mxu0 0
        %626 = vmatpush1.bf16.msra.mxu0 0
        %627 = vmatprep.subr.bf16.mxu0 0
        %628 = vmatpush1.bf16.msra.mxu0 0
        %629 = vmatprep.subr.bf16.mxu0 0
        %630 = vmatpush1.bf16.msra.mxu0 0
        %631 = vmatprep.subr.bf16.mxu0 0
        %632 = vmatpush1.bf16.msra.mxu0 0
        %633 = vmatprep.subr.bf16.mxu0 0
        %634 = vmatpush1.bf16.msra.mxu0 0
        %635 = vmatprep.subr.bf16.mxu0 0
        %636 = vmatpush1.bf16.msra.mxu0 0
        %637 = vmatprep.subr.bf16.mxu0 0
        %638 = vmatpush1.bf16.msra.mxu0 0
        %639 = vmatprep.subr.bf16.mxu0 0
        %640 = vmatpush1.bf16.msra.mxu0 0
        %641 = vmatprep.subr.bf16.mxu0 0
        %642 = vmatpush1.bf16.msra.mxu0 0
        %643 = vmatprep.mubr.bf16.mxu0 0
        %644 = vmatmul.mubr.bf16.gmra.mrb[0].mxu0 %v609
        %v645 = vpop.f32.mrb[0].mxu0
        %v646 = vadd.f32 0.0, %v645
        %v647 = vpop.f32.mrb[0].mxu0
        %v648 = vpop.f32.mrb[0].mxu0
        %v649 = vpop.f32.mrb[0].mxu0
        %650 = vdwg.mxu0
        %v651 = vld [vmem:[%s449] sm:$0xff]
        %v652 = vpack.c.bf16 %v651, %v651
        %v653 = vld [vmem:[#allocation13] sm:$0xf]
        %v654 = vld [vmem:[#allocation13 + $0x4] sm:$0xf]
        %v655 = vld [vmem:[#allocation13 + $0x8] sm:$0xf]
        %v656 = vld [vmem:[#allocation13 + $0xc] sm:$0xf]
        %v661 = vunpack.c.l.b16 %v653
        %v662 = vunpack.c.l.b16 %v654
        %v663 = vunpack.c.l.b16 %v655
        %v664 = vunpack.c.l.b16 %v656
        %v665 = vpack.c.b16 %v662, %v661
        %v666 = vpack.c.b16 %v664, %v663
        %v670 = vsel %vm546, %v652, 0
        %672 = vmatprep.subr.bf16.mxu0 0
        %673 = vmatpush1.bf16.msra.mxu0 %v665
        %674 = vmatprep.subr.bf16.mxu0 0
        %675 = vmatpush1.bf16.msra.mxu0 %v666
        %676 = vmatprep.subr.bf16.mxu0 0
        %677 = vmatpush1.bf16.msra.mxu0 0
        %678 = vmatprep.subr.bf16.mxu0 0
        %679 = vmatpush1.bf16.msra.mxu0 0
        %680 = vmatprep.subr.bf16.mxu0 0
        %681 = vmatpush1.bf16.msra.mxu0 0
        %682 = vmatprep.subr.bf16.mxu0 0
        %683 = vmatpush1.bf16.msra.mxu0 0
        %684 = vmatprep.subr.bf16.mxu0 0
        %685 = vmatpush1.bf16.msra.mxu0 0
        %686 = vmatprep.subr.bf16.mxu0 0
        %687 = vmatpush1.bf16.msra.mxu0 0
        %688 = vmatprep.subr.bf16.mxu0 0
        %689 = vmatpush1.bf16.msra.mxu0 0
        %690 = vmatprep.subr.bf16.mxu0 0
        %691 = vmatpush1.bf16.msra.mxu0 0
        %692 = vmatprep.subr.bf16.mxu0 0
        %693 = vmatpush1.bf16.msra.mxu0 0
        %694 = vmatprep.subr.bf16.mxu0 0
        %695 = vmatpush1.bf16.msra.mxu0 0
        %696 = vmatprep.subr.bf16.mxu0 0
        %697 = vmatpush1.bf16.msra.mxu0 0
        %698 = vmatprep.subr.bf16.mxu0 0
        %699 = vmatpush1.bf16.msra.mxu0 0
        %700 = vmatprep.subr.bf16.mxu0 0
        %701 = vmatpush1.bf16.msra.mxu0 0
        %702 = vmatprep.subr.bf16.mxu0 0
        %703 = vmatpush1.bf16.msra.mxu0 0
        %704 = vmatprep.mubr.bf16.mxu0 0
        %705 = vmatmul.mubr.bf16.gmra.mrb[0].mxu0 %v670
        %v706 = vpop.f32.mrb[0].mxu0
        %v707 = vadd.f32 0.0, %v706
        %v708 = vpop.f32.mrb[0].mxu0
        %v709 = vpop.f32.mrb[0].mxu0
        %v710 = vpop.f32.mrb[0].mxu0
        %711 = vdwg.mxu0
        %v712 = vpack.c.bf16 %v585, %v585
        %vm713 = vcmask 60416
        %714 = vst.msk [vmem:[%s505] sm:$0xf] %vm713, %v712
        %v715 = vpack.c.bf16 %v646, %v646
        %716 = vst.msk [vmem:[%s512] sm:$0xf] %vm713, %v715
        %v717 = vpack.c.bf16 %v707, %v707
        %718 = vst.msk [vmem:[%s519] sm:$0xf] %vm713, %v717
        %v720 = vunpack.c.l.b16 %v712
        %v721 = vpack.c.b16 %v720, %v720
        %722 = vrot.lane.b32.xlu0 %v721, 120
        %v723 = vpop.permute.xlu0 %722
        %s725 = scalar_lea.vmem %s505, 4 [#allocation14]
        %726 = vst.msk [vmem:[%s725] sm:$0xf] %vm713, %v723
        %v728 = vunpack.c.l.b16 %v715
        %v729 = vpack.c.b16 %v728, %v728
        %730 = vrot.lane.b32.xlu0 %v729, 120
        %v731 = vpop.permute.xlu0 %730
        %s733 = scalar_lea.vmem %s512, 4 [#allocation15]
        %734 = vst.msk [vmem:[%s733] sm:$0xf] %vm713, %v731
        %v736 = vunpack.c.l.b16 %v717
        %v737 = vpack.c.b16 %v736, %v736
        %738 = vrot.lane.b32.xlu0 %v737, 120
        %v739 = vpop.permute.xlu0 %738
        %s741 = scalar_lea.vmem %s519, 4 [#allocation17]
        %742 = vst.msk [vmem:[%s741] sm:$0xf] %vm713, %v739
        %743 = vrot.lane.b32.xlu0 %v721, 112
        %v744 = vpop.permute.xlu0 %743
        %s746 = scalar_lea.vmem %s505, 8 [#allocation14]
        %747 = vst.msk [vmem:[%s746] sm:$0xf] %vm713, %v744
        %748 = vrot.lane.b32.xlu0 %v729, 112
        %v749 = vpop.permute.xlu0 %748
        %s751 = scalar_lea.vmem %s512, 8 [#allocation15]
        %752 = vst.msk [vmem:[%s751] sm:$0xf] %vm713, %v749
        %753 = vrot.lane.b32.xlu0 %v737, 112
        %v754 = vpop.permute.xlu0 %753
        %s756 = scalar_lea.vmem %s519, 8 [#allocation17]
        %757 = vst.msk [vmem:[%s756] sm:$0xf] %vm713, %v754
        %758 = vrot.lane.b32.xlu0 %v721, 104
        %v759 = vpop.permute.xlu0 %758
        %s761 = scalar_lea.vmem %s505, 12 [#allocation14]
        %762 = vst.msk [vmem:[%s761] sm:$0xf] %vm713, %v759
        %763 = vrot.lane.b32.xlu0 %v729, 104
        %v764 = vpop.permute.xlu0 %763
        %s766 = scalar_lea.vmem %s512, 12 [#allocation15]
        %767 = vst.msk [vmem:[%s766] sm:$0xf] %vm713, %v764
        %768 = vrot.lane.b32.xlu0 %v737, 104
        %v769 = vpop.permute.xlu0 %768
        %s771 = scalar_lea.vmem %s519, 12 [#allocation17]
        %772 = vst.msk [vmem:[%s771] sm:$0xf] %vm713, %v769
        %s773 = sand.u32 %s225, 1
        %s774 = scalar_lea.sflag [#allocation4], %s773
        %s775 = sand.u32 %s225, 1
        %s776 = smul.addr %s775, 16
        %s777 = scalar_lea.vmem [#allocation14], %s776
        %s778 = sand.u32 %s35, 1
        %s779 = scalar_lea.sflag [#allocation16], %s778
        %s780 = sand.u32 %s253, 1
        %s781 = smul.addr %s780, 16
        %s782 = scalar_lea.vmem [#allocation15], %s781
        %s783 = sand.u32 %s35, 1
        %s784 = scalar_lea.sflag [#allocation16], %s783
        %s785 = sand.u32 %s281, 1
        %s786 = smul.addr %s785, 16
        %s787 = scalar_lea.vmem [#allocation17], %s786
        // Predicated region
        $region77: #{tpu_custom_call.1} parent=47 // pred_check
          %p788 = pneg %p235
        $region78: #{tpu_custom_call.1} parent=47 // pred_check_branch
          %790 = sbr.rel (%p788) target = $region80
        $region79: #{tpu_custom_call.1} parent=47 // pred_region
          %s792 = ssub.s32 256, 256
          %793 = vsyncadd %s774, %s792
          %s794 = smul.addr %s39, 4
          %s795 = sadd.s32 %s40, %s794
          %s796 = smul.addr %s795, 64
          %s797 = scalar_lea.hbm %s7, %s796
          %s798 = sshll.u32 %s777, 4
          %s799 = int_to_ptr.vmem [resolvable:$true] %s798
          %804 = dma.vmem_to_hbm [thread:$0]  %s799, 256, %s797, %s774, 64, 64, 4
        $region80: #{tpu_custom_call.1} parent=47 // pred_fallthru
          _
        // Predicated region
        $region81: #{tpu_custom_call.1} parent=47 // pred_check
          %p805 = pneg %p263
        $region82: #{tpu_custom_call.1} parent=47 // pred_check_branch
          %807 = sbr.rel (%p805) target = $region84
        $region83: #{tpu_custom_call.1} parent=47 // pred_region
          %s809 = ssub.s32 256, 256
          %810 = vsyncadd %s779, %s809
          %s811 = smul.addr %s39, 4
          %s812 = sadd.s32 %s40, %s811
          %s813 = smul.addr %s812, 64
          %s814 = scalar_lea.hbm %s8, %s813
          %s815 = sshll.u32 %s782, 4
          %s816 = int_to_ptr.vmem [resolvable:$true] %s815
          %821 = dma.vmem_to_hbm [thread:$0]  %s816, 256, %s814, %s779, 64, 64, 4
        $region84: #{tpu_custom_call.1} parent=47 // pred_fallthru
          _
        // Predicated region
        $region85: #{tpu_custom_call.1} parent=47 // pred_check
          %p822 = pneg %p291
        $region86: #{tpu_custom_call.1} parent=47 // pred_check_branch
          %824 = sbr.rel (%p822) target = $region88
        $region87: #{tpu_custom_call.1} parent=47 // pred_region
          %s826 = ssub.s32 256, 256
          %827 = vsyncadd %s784, %s826
          %s828 = smul.addr %s39, 4
          %s829 = sadd.s32 %s40, %s828
          %s830 = smul.addr %s829, 64
          %s831 = scalar_lea.hbm %s9, %s830
          %s832 = sshll.u32 %s787, 4
          %s833 = int_to_ptr.vmem [resolvable:$true] %s832
          %838 = dma.vmem_to_hbm [thread:$0]  %s833, 256, %s831, %s784, 64, 64, 4
        $region88: #{tpu_custom_call.1} parent=47 // pred_fallthru
          _
      $region48: #{tpu_custom_call.1} parent=5 // pred_fallthru
        _
      %p839 = scmp.le.s32.totalorder 2, %s30
      // Predicated region
      $region89: #{tpu_custom_call.1} parent=5 // pred_check
        %p840 = pneg %p839
      $region90: #{tpu_custom_call.1} parent=5 // pred_check_branch
        %842 = sbr.rel (%p840) target = $region92
      $region91: #{tpu_custom_call.1} parent=5 // pred_region
        %s843 = ssub.s32 %s30, 2
        // Predicated region
        $region93: #{tpu_custom_call.1} parent=91 // pred_check
          %p844 = pneg %p241
        $region94: #{tpu_custom_call.1} parent=91 // pred_check_branch
          %846 = sbr.rel (%p844) target = $region96
        $region95: #{tpu_custom_call.1} parent=91 // pred_region
          %s847 = sand.u32 %s226, 1
          %s848 = scalar_lea.sflag [#allocation4], %s847
          %s849 = sand.u32 %s226, 1
          %s850 = smul.addr %s849, 16
          %s851 = scalar_lea.vmem [#allocation14], %s850
          %852 = dma.done %s848, 256
        $region96: #{tpu_custom_call.1} parent=91 // pred_fallthru
          _
        // Predicated region
        $region97: #{tpu_custom_call.1} parent=91 // pred_check
          %p853 = pneg %p269
        $region98: #{tpu_custom_call.1} parent=91 // pred_check_branch
          %855 = sbr.rel (%p853) target = $region100
        $region99: #{tpu_custom_call.1} parent=91 // pred_region
          %s856 = sand.u32 %s36, 1
          %s857 = scalar_lea.sflag [#allocation16], %s856
          %s858 = sand.u32 %s254, 1
          %s859 = smul.addr %s858, 16
          %s860 = scalar_lea.vmem [#allocation15], %s859
          %861 = dma.done %s857, 256
        $region100: #{tpu_custom_call.1} parent=91 // pred_fallthru
          _
        // Predicated region
        $region101: #{tpu_custom_call.1} parent=91 // pred_check
          %p862 = pneg %p297
        $region102: #{tpu_custom_call.1} parent=91 // pred_check_branch
          %864 = sbr.rel (%p862) target = $region104
        $region103: #{tpu_custom_call.1} parent=91 // pred_region
          %s865 = sand.u32 %s36, 1
          %s866 = scalar_lea.sflag [#allocation16], %s865
          %s867 = sand.u32 %s282, 1
          %s868 = smul.addr %s867, 16
          %s869 = scalar_lea.vmem [#allocation17], %s868
          %870 = dma.done %s866, 256
        $region104: #{tpu_custom_call.1} parent=91 // pred_fallthru
          _
      $region92: #{tpu_custom_call.1} parent=5 // pred_fallthru
        _
    $region6: #{tpu_custom_call.1} parent=1 // loop_footer
      %s34 = sadd.s32 1, %s30
    $region7: #{tpu_custom_call.1} parent=1 // loop_footer_branch
      %29 = sbr.rel target = $region3
    $region8: #{tpu_custom_call.1} parent=1 // loop_exit
      _
    %871 = vsyncpa [#allocation3], 1
    %s872 = scalar_lea.sflag [#allocation3], 1
    %873 = vsyncpa %s872, 1
    %874 = vsyncpa [#allocation6], 1
    %s875 = scalar_lea.sflag [#allocation6], 1
    %876 = vsyncpa %s875, 1
    %877 = vsyncpa [#allocation9], 1
    %878 = vsyncpa [#allocation12], 1
    %879 = vsyncpa [#allocation4], 1
    %s880 = scalar_lea.sflag [#allocation4], 1
    %881 = vsyncpa %s880, 1
    %882 = vsyncpa [#allocation16], 1
    %s883 = scalar_lea.sflag [#allocation16], 1
    %884 = vsyncpa %s883, 1

</llo_original>
